<compile_context>
chip_gen: v7x
topology: tpu7x:2x2x1
jax: 0.10.0
libtpu: 0.0.40
codegen_flags: <defaults>
</compile_context>

<pallas_src>
import functools

import jax
import jax.numpy as jnp
from jax import lax
from jax.experimental import pallas as pl
from jax.experimental.pallas import tpu as pltpu


def _round_up(x, m):
    return -(-x // m) * m


def _contrastive_loss_kernel(
    ti_ref, tj_ref, w_ref,            # scalar prefetch (SMEM): flat (num_cores*steps,) i32
    reps_ref,                         # (m_pad, D) bf16, VMEM-resident pre-normalized reps
    total_ref, pos_ref, diag_ref,     # (1, 8, tile) f32 per-core partial-sum accumulators
    *, m_valid, tile, steps_per_core, batch_size, inv_temperature,
):
    c = pl.program_id(0)              # core slot ("parallel")
    t = pl.program_id(1)              # tile-pair step ("arbitrary")
    idx = c * steps_per_core + t
    ti = ti_ref[idx]
    tj = tj_ref[idx]
    w = w_ref[idx]                    # 1 = diagonal tile, 2 = off-diagonal, 0 = padding step
    wf = w.astype(jnp.float32)

    @pl.when(t == 0)
    def _init():
        total_ref[...] = jnp.zeros_like(total_ref)
        pos_ref[...] = jnp.zeros_like(pos_ref)
        diag_ref[...] = jnp.zeros_like(diag_ref)

    # row / col tiles sliced from the single resident bf16 block (VMEM loads, no DMA)
    zr = reps_ref[pl.ds(pl.multiple_of(ti * tile, tile), tile), :]
    zc = reps_ref[pl.ds(pl.multiple_of(tj * tile, tile), tile), :]

    # (tile, tile) cosine-similarity tile on the MXU: bf16 operands, f32 accumulation
    sim = lax.dot_general(zr, zc, (((1,), (1,)), ((), ())),
                          preferred_element_type=jnp.float32)

    # pad masking: push padded rows/cols to -inf before exp -> exp underflows to 0.
    # Indices stay broadcastable (tile,1)/(1,tile); no full (tile,tile) i32 tensors here.
    row_l = lax.broadcasted_iota(jnp.int32, (tile, 1), 0)
    col_l = lax.broadcasted_iota(jnp.int32, (1, tile), 1)
    row_bias = jnp.where(row_l + ti * tile < m_valid, 0.0, -1e9)
    col_bias = jnp.where(col_l + tj * tile < m_valid, 0.0, -1e9)
    e = jnp.exp(sim * inv_temperature + row_bias + col_bias)    # (tile, tile) f32

    def _fold(x):
        # (tile, tile) -> (8, tile) partial sums: pure VPU adds across sublane groups,
        # no cross-lane (XLU) reduction; the scalar reduction happens once in the wrapper.
        return x.reshape(tile // 8, 8, tile).sum(axis=0)

    # total sum (off-diagonal tiles weighted 2x for Z Z^T symmetry; padding steps weight 0)
    total_ref[0] += wf * _fold(e)

    # positives live on |col - row| in {bs, 2bs, 3bs}; build the full mask only on tiles
    # whose global diff range can intersect a band (cheap scalar test)
    d = (tj - ti) * tile
    d_lo = d - (tile - 1)
    d_hi = d + (tile - 1)

    def _hits(o):
        return ((d_lo <= o) & (o <= d_hi)) | ((d_lo <= -o) & (-o <= d_hi))

    has_pos = _hits(batch_size) | _hits(2 * batch_size) | _hits(3 * batch_size)

    @pl.when(has_pos)
    def _pos():
        adiff = jnp.abs((col_l - row_l) + d)                    # (tile, tile) i32, gated
        pmask = ((adiff == batch_size)
                 | (adiff == 2 * batch_size)
                 | (adiff == 3 * batch_size))
        pos_ref[0] += wf * _fold(jnp.where(pmask, e, 0.0))

    # self-similarity diagonal exists only in (real) diagonal tiles
    @pl.when((ti == tj) & (w > 0))
    def _diag():
        dmask = row_l == col_l                                  # (tile, tile) bool, gated
        diag_ref[0] += _fold(jnp.where(dmask, e, 0.0))


def contrastive_loss(emb_i, emb_j, *, batch_size, temperature=0.5, tile=None, num_cores=2):
    """emb_i / emb_j: (2*batch_size - 1, D) each, any float dtype."""
    n_rows = 2 * batch_size - 1
    assert emb_i.shape == emb_j.shape and emb_i.shape[0] == n_rows
    D = emb_i.shape[1]
    M = 4 * batch_size - 2

    # 256 matches the v6e/v7x 256x256 MXU and decomposes cleanly onto v5e's 4x128x128 MXUs;
    # smaller tiles only multiply per-step overhead. Shrink only for tiny problems.
    if tile is None:
        tile = min(256, _round_up(M, 8))
    assert tile % 8 == 0
    m_pad = _round_up(M, tile)
    nt = m_pad // tile

    # normalize + cast to bf16 once (one pass); padded rows stay zero and are masked in-kernel
    reps = jnp.concatenate([emb_i, emb_j], axis=0).astype(jnp.float32)
    reps = reps * lax.rsqrt(jnp.maximum(jnp.sum(reps * reps, axis=1, keepdims=True), 1e-24))
    reps = reps.astype(jnp.bfloat16)
    if m_pad > M:
        reps = jnp.pad(reps, ((0, m_pad - M), (0, 0)))

    # upper-triangular tile sweep (diag weight 1, off-diag weight 2), split round-robin over
    # `num_cores` parallel grid slots; ragged cores are padded with weight-0 dummy steps.
    coords = [(i, j, 1 if i == j else 2) for i in range(nt) for j in range(i, nt)]
    n_real = len(coords)
    steps_per_core = max(1, -(-n_real // num_cores))
    ti_l, tj_l, w_l = [], [], []
    for c in range(num_cores):
        chunk = coords[c::num_cores]
        chunk = chunk + [(0, 0, 0)] * (steps_per_core - len(chunk))
        ti_l += [x[0] for x in chunk]
        tj_l += [x[1] for x in chunk]
        w_l += [x[2] for x in chunk]
    ti_arr = jnp.asarray(ti_l, dtype=jnp.int32)
    tj_arr = jnp.asarray(tj_l, dtype=jnp.int32)
    w_arr = jnp.asarray(w_l, dtype=jnp.int32)

    kernel = functools.partial(
        _contrastive_loss_kernel,
        m_valid=M, tile=tile, steps_per_core=steps_per_core,
        batch_size=batch_size, inv_temperature=float(1.0 / temperature),
    )

    acc_spec = pl.BlockSpec((1, 8, tile), lambda c, t, ti, tj, w: (c, 0, 0))
    acc_shape = jax.ShapeDtypeStruct((num_cores, 8, tile), jnp.float32)

    grid_spec = pltpu.PrefetchScalarGridSpec(
        num_scalar_prefetch=3,
        grid=(num_cores, steps_per_core),
        in_specs=[
            # constant block index -> whole pre-normalized bf16 block DMA'd once, resident
            pl.BlockSpec((m_pad, D), lambda c, t, ti, tj, w: (0, 0)),
        ],
        out_specs=(acc_spec, acc_spec, acc_spec),
    )

    total_p, pos_p, diag_p = pl.pallas_call(
        kernel,
        out_shape=(acc_shape, acc_shape, acc_shape),
        grid_spec=grid_spec,
        compiler_params=pltpu.CompilerParams(
            # core axis parallel (v7x megacore), tile-pair accumulation axis sequential
            dimension_semantics=("parallel", "arbitrary"),
        ),
        cost_estimate=pl.CostEstimate(
            flops=2 * n_real * tile * tile * D,
            transcendentals=n_real * tile * tile,
            bytes_accessed=m_pad * D * 2 + num_cores * 3 * 8 * tile * 4,
        ),
    )(ti_arr, tj_arr, w_arr, reps)

    # final cross-lane reductions + log: once, outside the kernel
    total = jnp.sum(total_p)
    nom = jnp.sum(pos_p)
    diag = jnp.sum(diag_p)
    den = total - diag - nom
    return -jnp.log(nom / den) / (4.0 * batch_size)


def _reference_loss(emb_i, emb_j, *, batch_size, temperature=0.5):
    """Pure-JAX reference mirroring the PyTorch forward exactly (f32)."""
    def normalize(x):
        n = jnp.sqrt(jnp.sum(x * x, axis=1, keepdims=True))
        return x / jnp.maximum(n, 1e-12)

    z = jnp.concatenate(
        [normalize(emb_i.astype(jnp.float32)), normalize(emb_j.astype(jnp.float32))],
        axis=0,
    )
    sim = z @ z.T
    M = sim.shape[0]
    diff = jnp.abs(jnp.arange(M)[None, :] - jnp.arange(M)[:, None])
    pos = (
        (diff == batch_size) | (diff == 2 * batch_size) | (diff == 3 * batch_size)
    ).astype(jnp.float32)
    neg = (diff != 0).astype(jnp.float32)
    e = jnp.exp(sim / temperature)
    nom = jnp.sum(pos * e)
    den = jnp.sum(neg * e) - nom
    return -jnp.log(nom / den) / (4.0 * batch_size)


if __name__ == "__main__":
    cases = [
        dict(batch_size=2, D=32, tile=None),   # M=6: single tile
        dict(batch_size=3, D=64, tile=None),   # M=10: exercises the +-3*batch_size band
        dict(batch_size=3, D=64, tile=8),      # forced nt=2: off-diag 2x weight, dummy step
    ]
    for case in cases:
        bs, D, tile = case["batch_size"], case["D"], case["tile"]
        n_rows = 2 * bs - 1
        k_i, k_j = jax.random.split(jax.random.PRNGKey(0))
        emb_i = jax.random.normal(k_i, (n_rows, D), dtype=jnp.float32)
        emb_j = jax.random.normal(k_j, (n_rows, D), dtype=jnp.float32)

        loss = contrastive_loss(emb_i, emb_j, batch_size=bs, temperature=0.5, tile=tile)
        loss = jax.block_until_ready(loss)

        ref = _reference_loss(emb_i, emb_j, batch_size=bs, temperature=0.5)
        # bf16 MXU operands => ~1e-3-level deviation from the pure-f32 reference
        assert jnp.allclose(loss, ref, rtol=1e-2, atol=1e-2), (case, loss, ref)

    print("KERNEL_OK")
</pallas_src>

<mosaic_0001>
module attributes {stable_mosaic.version = 11 : i64} {
  func.func @_contrastive_loss_kernel(%arg0: i32, %arg1: i32, %arg2: memref<2xi32, #tpu.memory_space<smem>>, %arg3: memref<2xi32, #tpu.memory_space<smem>>, %arg4: memref<2xi32, #tpu.memory_space<smem>>, %arg5: memref<8x32xbf16, #tpu.memory_space<vmem>>, %arg6: memref<1x8x8xf32, #tpu.memory_space<vmem>>, %arg7: memref<1x8x8xf32, #tpu.memory_space<vmem>>, %arg8: memref<1x8x8xf32, #tpu.memory_space<vmem>>) attributes {dimension_semantics = [#tpu.dimension_semantics<parallel>, #tpu.dimension_semantics<arbitrary>], iteration_bounds = array<i64: 2, 1>, scalar_prefetch = 3 : i64, scratch_operands = 0 : i64, tpu.core_type = #tpu.core_type<tc>, window_params = [{pipeline_mode = #tpu.pipeline_mode<synchronous>, transform_indices = @transform_0, window_bounds = array<i64: 8, 32>}, {transform_indices = @transform_1, window_bounds = array<i64: 1, 8, 8>}, {transform_indices = @transform_2, window_bounds = array<i64: 1, 8, 8>}, {transform_indices = @transform_3, window_bounds = array<i64: 1, 8, 8>}]} {
    %c1_i32 = arith.constant 1 : i32
    %0 = arith.muli %arg0, %c1_i32 : i32
    %1 = arith.addi %0, %arg1 : i32
    %2 = arith.index_cast %1 : i32 to index
    %3 = memref.load %arg2[%2] : memref<2xi32, #tpu.memory_space<smem>>
    %4 = arith.index_cast %1 : i32 to index
    %5 = memref.load %arg3[%4] : memref<2xi32, #tpu.memory_space<smem>>
    %6 = arith.index_cast %1 : i32 to index
    %7 = memref.load %arg4[%6] : memref<2xi32, #tpu.memory_space<smem>>
    %8 = arith.sitofp %7 : i32 to f32
    %c0_i32 = arith.constant 0 : i32
    %9 = arith.cmpi eq, %arg1, %c0_i32 : i32
    %10 = arith.extui %9 : i1 to i32
    %c0_i32_0 = arith.constant 0 : i32
    %11 = arith.cmpi ne, %10, %c0_i32_0 : i32
    scf.if %11 {
      %cst_30 = arith.constant 0.000000e+00 : f32
      %90 = vector.broadcast %cst_30 : f32 to vector<1x8x8xf32>
      %c0_31 = arith.constant 0 : index
      %c0_32 = arith.constant 0 : index
      %c0_33 = arith.constant 0 : index
      %91 = vector.load %arg6[%c0_31, %c0_32, %c0_33] : memref<1x8x8xf32, #tpu.memory_space<vmem>>, vector<1x8x8xf32>
      tpu.vector_store %arg6[%c0_31, %c0_32, %c0_33], %90 {strides = array<i32>} : memref<1x8x8xf32, #tpu.memory_space<vmem>>, vector<1x8x8xf32>,
      %cst_34 = arith.constant 0.000000e+00 : f32
      %92 = vector.broadcast %cst_34 : f32 to vector<1x8x8xf32>
      %c0_35 = arith.constant 0 : index
      %c0_36 = arith.constant 0 : index
      %c0_37 = arith.constant 0 : index
      %93 = vector.load %arg7[%c0_35, %c0_36, %c0_37] : memref<1x8x8xf32, #tpu.memory_space<vmem>>, vector<1x8x8xf32>
      tpu.vector_store %arg7[%c0_35, %c0_36, %c0_37], %92 {strides = array<i32>} : memref<1x8x8xf32, #tpu.memory_space<vmem>>, vector<1x8x8xf32>,
      %cst_38 = arith.constant 0.000000e+00 : f32
      %94 = vector.broadcast %cst_38 : f32 to vector<1x8x8xf32>
      %c0_39 = arith.constant 0 : index
      %c0_40 = arith.constant 0 : index
      %c0_41 = arith.constant 0 : index
      %95 = vector.load %arg8[%c0_39, %c0_40, %c0_41] : memref<1x8x8xf32, #tpu.memory_space<vmem>>, vector<1x8x8xf32>
      tpu.vector_store %arg8[%c0_39, %c0_40, %c0_41], %94 {strides = array<i32>} : memref<1x8x8xf32, #tpu.memory_space<vmem>>, vector<1x8x8xf32>,
    } else {
    }
    %c8_i32 = arith.constant 8 : i32
    %12 = arith.muli %3, %c8_i32 : i32
    %13 = tpu.assume_multiple %12, 8 : i32
    %14 = arith.index_cast %13 : i32 to index
    %c0 = arith.constant 0 : index
    %15 = vector.load %arg5[%14, %c0] : memref<8x32xbf16, #tpu.memory_space<vmem>>, vector<8x32xbf16>
    %c8_i32_1 = arith.constant 8 : i32
    %16 = arith.muli %5, %c8_i32_1 : i32
    %17 = tpu.assume_multiple %16, 8 : i32
    %18 = arith.index_cast %17 : i32 to index
    %c0_2 = arith.constant 0 : index
    %19 = vector.load %arg5[%18, %c0_2] : memref<8x32xbf16, #tpu.memory_space<vmem>>, vector<8x32xbf16>
    %cst = arith.constant dense<0.000000e+00> : vector<8x8xf32>
    %20 = tpu.matmul %15, %19, %cst {dimension_numbers = #tpu.dot_dimension_numbers<[1], [1], [0], [0], [0, 0, 1, 0], [], []>} : vector<8x32xbf16>, vector<8x32xbf16>, vector<8x8xf32> -> vector<8x8xf32>
    %21 = tpu.iota {dimensions = array<i32: 0>} : vector<8x1xi32>
    %22 = tpu.iota {dimensions = array<i32: 1>} : vector<1x8xi32>
    %c8_i32_3 = arith.constant 8 : i32
    %23 = arith.muli %3, %c8_i32_3 : i32
    %24 = vector.broadcast %23 : i32 to vector<8x1xi32>
    %25 = arith.addi %21, %24 : vector<8x1xi32>
    %c6_i32 = arith.constant 6 : i32
    %26 = vector.broadcast %c6_i32 : i32 to vector<8x1xi32>
    %27 = arith.cmpi slt, %25, %26 : vector<8x1xi32>
    %cst_4 = arith.constant 0.000000e+00 : f32
    %cst_5 = arith.constant -1.000000e+09 : f32
    %28 = vector.broadcast %cst_4 : f32 to vector<8x1xf32>
    %29 = vector.broadcast %cst_5 : f32 to vector<8x1xf32>
    %30 = arith.select %27, %28, %29 : vector<8x1xi1>, vector<8x1xf32>
    %c8_i32_6 = arith.constant 8 : i32
    %31 = arith.muli %5, %c8_i32_6 : i32
    %32 = vector.broadcast %31 : i32 to vector<1x8xi32>
    %33 = arith.addi %22, %32 : vector<1x8xi32>
    %c6_i32_7 = arith.constant 6 : i32
    %34 = vector.broadcast %c6_i32_7 : i32 to vector<1x8xi32>
    %35 = arith.cmpi slt, %33, %34 : vector<1x8xi32>
    %cst_8 = arith.constant 0.000000e+00 : f32
    %cst_9 = arith.constant -1.000000e+09 : f32
    %36 = vector.broadcast %cst_8 : f32 to vector<1x8xf32>
    %37 = vector.broadcast %cst_9 : f32 to vector<1x8xf32>
    %38 = arith.select %35, %36, %37 : vector<1x8xi1>, vector<1x8xf32>
    %cst_10 = arith.constant 2.000000e+00 : f32
    %39 = vector.broadcast %cst_10 : f32 to vector<8x8xf32>
    %40 = arith.mulf %20, %39 : vector<8x8xf32>
    %41 = vector.broadcast %30 : vector<8x1xf32> to vector<8x8xf32>
    %42 = arith.addf %40, %41 : vector<8x8xf32>
    %43 = vector.broadcast %38 : vector<1x8xf32> to vector<8x8xf32>
    %44 = arith.addf %42, %43 : vector<8x8xf32>
    %45 = math.exp %44 : vector<8x8xf32>
    %c0_11 = arith.constant 0 : index
    %c0_12 = arith.constant 0 : index
    %c0_13 = arith.constant 0 : index
    %46 = vector.load %arg6[%c0_11, %c0_12, %c0_13] : memref<1x8x8xf32, #tpu.memory_space<vmem>>, vector<1x8x8xf32>
    %47 = vector.shape_cast %46 : vector<1x8x8xf32> to vector<8x8xf32>
    %48 = vector.shape_cast %45 : vector<8x8xf32> to vector<1x8x8xf32>
    %cst_14 = arith.constant dense<0.000000e+00> : vector<8x8xf32>
    %49 = vector.multi_reduction <add>, %48, %cst_14 [0] : vector<1x8x8xf32> to vector<8x8xf32>
    %50 = vector.broadcast %8 : f32 to vector<8x8xf32>
    %51 = arith.mulf %50, %49 : vector<8x8xf32>
    %52 = arith.addf %47, %51 : vector<8x8xf32>
    %c0_15 = arith.constant 0 : index
    %c0_16 = arith.constant 0 : index
    %c0_17 = arith.constant 0 : index
    %53 = vector.load %arg6[%c0_15, %c0_16, %c0_17] : memref<1x8x8xf32, #tpu.memory_space<vmem>>, vector<1x8x8xf32>
    %54 = vector.shape_cast %53 : vector<1x8x8xf32> to vector<8x8xf32>
    %55 = vector.shape_cast %52 : vector<8x8xf32> to vector<1x8x8xf32>
    tpu.vector_store %arg6[%c0_15, %c0_16, %c0_17], %55 {strides = array<i32>} : memref<1x8x8xf32, #tpu.memory_space<vmem>>, vector<1x8x8xf32>,
    %56 = arith.subi %5, %3 : i32
    %c8_i32_18 = arith.constant 8 : i32
    %57 = arith.muli %56, %c8_i32_18 : i32
    %c7_i32 = arith.constant 7 : i32
    %58 = arith.subi %57, %c7_i32 : i32
    %c7_i32_19 = arith.constant 7 : i32
    %59 = arith.addi %57, %c7_i32_19 : i32
    %c2_i32 = arith.constant 2 : i32
    %60 = arith.cmpi sle, %58, %c2_i32 : i32
    %c2_i32_20 = arith.constant 2 : i32
    %61 = arith.cmpi sge, %59, %c2_i32_20 : i32
    %62 = arith.andi %60, %61 : i1
    %c-2_i32 = arith.constant -2 : i32
    %63 = arith.cmpi sle, %58, %c-2_i32 : i32
    %c-2_i32_21 = arith.constant -2 : i32
    %64 = arith.cmpi sge, %59, %c-2_i32_21 : i32
    %65 = arith.andi %63, %64 : i1
    %66 = arith.ori %62, %65 : i1
    %c4_i32 = arith.constant 4 : i32
    %67 = arith.cmpi sle, %58, %c4_i32 : i32
    %c4_i32_22 = arith.constant 4 : i32
    %68 = arith.cmpi sge, %59, %c4_i32_22 : i32
    %69 = arith.andi %67, %68 : i1
    %c-4_i32 = arith.constant -4 : i32
    %70 = arith.cmpi sle, %58, %c-4_i32 : i32
    %c-4_i32_23 = arith.constant -4 : i32
    %71 = arith.cmpi sge, %59, %c-4_i32_23 : i32
    %72 = arith.andi %70, %71 : i1
    %73 = arith.ori %69, %72 : i1
    %74 = arith.ori %66, %73 : i1
    %c6_i32_24 = arith.constant 6 : i32
    %75 = arith.cmpi sle, %58, %c6_i32_24 : i32
    %c6_i32_25 = arith.constant 6 : i32
    %76 = arith.cmpi sge, %59, %c6_i32_25 : i32
    %77 = arith.andi %75, %76 : i1
    %c-6_i32 = arith.constant -6 : i32
    %78 = arith.cmpi sle, %58, %c-6_i32 : i32
    %c-6_i32_26 = arith.constant -6 : i32
    %79 = arith.cmpi sge, %59, %c-6_i32_26 : i32
    %80 = arith.andi %78, %79 : i1
    %81 = arith.ori %77, %80 : i1
    %82 = arith.ori %74, %81 : i1
    %83 = arith.extui %82 : i1 to i32
    %c0_i32_27 = arith.constant 0 : i32
    %84 = arith.cmpi ne, %83, %c0_i32_27 : i32
    scf.if %84 {
      %90 = vector.broadcast %22 : vector<1x8xi32> to vector<8x8xi32>
      %91 = vector.broadcast %21 : vector<8x1xi32> to vector<8x8xi32>
      %92 = arith.subi %90, %91 : vector<8x8xi32>
      %93 = vector.broadcast %57 : i32 to vector<8x8xi32>
      %94 = arith.addi %92, %93 : vector<8x8xi32>
      %95 = math.absi %94 : vector<8x8xi32>
      %c2_i32_30 = arith.constant 2 : i32
      %96 = vector.broadcast %c2_i32_30 : i32 to vector<8x8xi32>
      %97 = arith.cmpi eq, %95, %96 : vector<8x8xi32>
      %c4_i32_31 = arith.constant 4 : i32
      %98 = vector.broadcast %c4_i32_31 : i32 to vector<8x8xi32>
      %99 = arith.cmpi eq, %95, %98 : vector<8x8xi32>
      %100 = arith.ori %97, %99 : vector<8x8xi1>
      %c6_i32_32 = arith.constant 6 : i32
      %101 = vector.broadcast %c6_i32_32 : i32 to vector<8x8xi32>
      %102 = arith.cmpi eq, %95, %101 : vector<8x8xi32>
      %103 = arith.ori %100, %102 : vector<8x8xi1>
      %c0_33 = arith.constant 0 : index
      %c0_34 = arith.constant 0 : index
      %c0_35 = arith.constant 0 : index
      %104 = vector.load %arg7[%c0_33, %c0_34, %c0_35] : memref<1x8x8xf32, #tpu.memory_space<vmem>>, vector<1x8x8xf32>
      %105 = vector.shape_cast %104 : vector<1x8x8xf32> to vector<8x8xf32>
      %cst_36 = arith.constant 0.000000e+00 : f32
      %106 = vector.broadcast %cst_36 : f32 to vector<8x8xf32>
      %107 = arith.select %103, %45, %106 : vector<8x8xi1>, vector<8x8xf32>
      %108 = vector.shape_cast %107 : vector<8x8xf32> to vector<1x8x8xf32>
      %cst_37 = arith.constant dense<0.000000e+00> : vector<8x8xf32>
      %109 = vector.multi_reduction <add>, %108, %cst_37 [0] : vector<1x8x8xf32> to vector<8x8xf32>
      %110 = vector.broadcast %8 : f32 to vector<8x8xf32>
      %111 = arith.mulf %110, %109 : vector<8x8xf32>
      %112 = arith.addf %105, %111 : vector<8x8xf32>
      %c0_38 = arith.constant 0 : index
      %c0_39 = arith.constant 0 : index
      %c0_40 = arith.constant 0 : index
      %113 = vector.load %arg7[%c0_38, %c0_39, %c0_40] : memref<1x8x8xf32, #tpu.memory_space<vmem>>, vector<1x8x8xf32>
      %114 = vector.shape_cast %113 : vector<1x8x8xf32> to vector<8x8xf32>
      %115 = vector.shape_cast %112 : vector<8x8xf32> to vector<1x8x8xf32>
      tpu.vector_store %arg7[%c0_38, %c0_39, %c0_40], %115 {strides = array<i32>} : memref<1x8x8xf32, #tpu.memory_space<vmem>>, vector<1x8x8xf32>,
    } else {
    }
    %85 = arith.cmpi eq, %3, %5 : i32
    %c0_i32_28 = arith.constant 0 : i32
    %86 = arith.cmpi sgt, %7, %c0_i32_28 : i32
    %87 = arith.andi %85, %86 : i1
    %88 = arith.extui %87 : i1 to i32
    %c0_i32_29 = arith.constant 0 : i32
    %89 = arith.cmpi ne, %88, %c0_i32_29 : i32
    scf.if %89 {
      %90 = vector.broadcast %21 : vector<8x1xi32> to vector<8x8xi32>
      %91 = vector.broadcast %22 : vector<1x8xi32> to vector<8x8xi32>
      %92 = arith.cmpi eq, %90, %91 : vector<8x8xi32>
      %c0_30 = arith.constant 0 : index
      %c0_31 = arith.constant 0 : index
      %c0_32 = arith.constant 0 : index
      %93 = vector.load %arg8[%c0_30, %c0_31, %c0_32] : memref<1x8x8xf32, #tpu.memory_space<vmem>>, vector<1x8x8xf32>
      %94 = vector.shape_cast %93 : vector<1x8x8xf32> to vector<8x8xf32>
      %cst_33 = arith.constant 0.000000e+00 : f32
      %95 = vector.broadcast %cst_33 : f32 to vector<8x8xf32>
      %96 = arith.select %92, %45, %95 : vector<8x8xi1>, vector<8x8xf32>
      %97 = vector.shape_cast %96 : vector<8x8xf32> to vector<1x8x8xf32>
      %cst_34 = arith.constant dense<0.000000e+00> : vector<8x8xf32>
      %98 = vector.multi_reduction <add>, %97, %cst_34 [0] : vector<1x8x8xf32> to vector<8x8xf32>
      %99 = arith.addf %94, %98 : vector<8x8xf32>
      %c0_35 = arith.constant 0 : index
      %c0_36 = arith.constant 0 : index
      %c0_37 = arith.constant 0 : index
      %100 = vector.load %arg8[%c0_35, %c0_36, %c0_37] : memref<1x8x8xf32, #tpu.memory_space<vmem>>, vector<1x8x8xf32>
      %101 = vector.shape_cast %100 : vector<1x8x8xf32> to vector<8x8xf32>
      %102 = vector.shape_cast %99 : vector<8x8xf32> to vector<1x8x8xf32>
      tpu.vector_store %arg8[%c0_35, %c0_36, %c0_37], %102 {strides = array<i32>} : memref<1x8x8xf32, #tpu.memory_space<vmem>>, vector<1x8x8xf32>,
    } else {
    }
    return
  }
  func.func @transform_0(%arg0: i32, %arg1: i32, %arg2: memref<2xi32, #tpu.memory_space<smem>>, %arg3: memref<2xi32, #tpu.memory_space<smem>>, %arg4: memref<2xi32, #tpu.memory_space<smem>>) -> (i32, i32) {
    %c0_i32 = arith.constant 0 : i32
    %c0_i32_0 = arith.constant 0 : i32
    %c0_i32_1 = arith.constant 0 : i32
    return %c0_i32, %c0_i32_0 : i32, i32
  }
  func.func @transform_1(%arg0: i32, %arg1: i32, %arg2: memref<2xi32, #tpu.memory_space<smem>>, %arg3: memref<2xi32, #tpu.memory_space<smem>>, %arg4: memref<2xi32, #tpu.memory_space<smem>>) -> (i32, i32, i32) {
    %c0_i32 = arith.constant 0 : i32
    %c0_i32_0 = arith.constant 0 : i32
    %c0_i32_1 = arith.constant 0 : i32
    return %arg0, %c0_i32, %c0_i32_0 : i32, i32, i32
  }
  func.func @transform_2(%arg0: i32, %arg1: i32, %arg2: memref<2xi32, #tpu.memory_space<smem>>, %arg3: memref<2xi32, #tpu.memory_space<smem>>, %arg4: memref<2xi32, #tpu.memory_space<smem>>) -> (i32, i32, i32) {
    %c0_i32 = arith.constant 0 : i32
    %c0_i32_0 = arith.constant 0 : i32
    %c0_i32_1 = arith.constant 0 : i32
    return %arg0, %c0_i32, %c0_i32_0 : i32, i32, i32
  }
  func.func @transform_3(%arg0: i32, %arg1: i32, %arg2: memref<2xi32, #tpu.memory_space<smem>>, %arg3: memref<2xi32, #tpu.memory_space<smem>>, %arg4: memref<2xi32, #tpu.memory_space<smem>>) -> (i32, i32, i32) {
    %c0_i32 = arith.constant 0 : i32
    %c0_i32_0 = arith.constant 0 : i32
    %c0_i32_1 = arith.constant 0 : i32
    return %arg0, %c0_i32, %c0_i32_0 : i32, i32, i32
  }
}

</mosaic_0001>

<llo_original>
// kernel: tpu_custom_call.1
$region0: #{tpu_custom_call.1}
  #allocation0 [shape = 'u32[]', space=smem, size = 0x4, offset = 0x4, fixed_abs, tag = 'smem constant byte address 0x4 - core index']
  #allocation1 [shape = 'u32[144,128]{1,0:T(1,128)}', space=vmem, size = 0x12000, scoped, tag = 'internal scratch']
  #allocation2 [shape = 's32[1]{0}', space=sflag, size = 0x4, scoped, tag = 'scoped memory for tpu_custom_call.1']
  #allocation3 [shape = 'u8[512]{0}', space=smem, size = 0x200, scoped, tag = 'prefetched SMEM operand 0']
  #allocation4 [shape = 'u8[512]{0}', space=smem, size = 0x200, scoped, tag = 'prefetched SMEM operand 1']
  #allocation5 [shape = 'u8[512]{0}', space=smem, size = 0x200, scoped, tag = 'prefetched SMEM operand 2']
  %s0 = inlined_call_operand.hbm [shape: s32[2], index: 0, kind: input, shape index: {}]
  %s1 = inlined_call_operand.vmem [shape: s32[2], index: 1, kind: input, shape index: {}]
  %s2 = inlined_call_operand.vmem [shape: s32[2], index: 2, kind: input, shape index: {}]
  %s3 = inlined_call_operand.vmem [shape: bf16[8,32], index: 3, kind: input, shape index: {}]
  %s4 = inlined_call_operand.hbm [shape: f32[2,8,8], index: 4, kind: output, shape index: {0}]
  %s5 = inlined_call_operand.hbm [shape: f32[2,8,8], index: 5, kind: output, shape index: {1}]
  %s6 = inlined_call_operand.hbm [shape: f32[2,8,8], index: 6, kind: output, shape index: {2}]
  %7 = xla_tuple %s4, %s5, %s6
  %s8 = sld [smem:[#allocation0]]
  $region65: #{tpu_custom_call.1} parent=0
    _
  %s10 = ssub.s32 1, %s8
  %s11 = scalar_select 0, %s10, %s8
  %13 = dma.hbm_to_smem %s0, 16, [#allocation3], [#allocation2]
  %s14 = sshll.u32 %s1, 4
  %s15 = int_to_ptr.vmem [resolvable:$true] %s14
  %17 = dma.vmem_to_smem %s15, 16, [#allocation4], [#allocation2]
  %s18 = sshll.u32 %s2, 4
  %s19 = int_to_ptr.vmem [resolvable:$true] %s18
  %21 = dma.vmem_to_smem %s19, 16, [#allocation5], [#allocation2]
  %22 = dma.done [#allocation2], 48
  %23 = sfence
  $region1: #{tpu_custom_call.1} parent=0
    #allocation6 [shape = 'u8[8192]{0}', space=vmem, size = 0x2000, scoped, tag = 'output window, operand 0']
    #allocation7 [shape = 's32[2]{0}', space=sflag, size = 0x8, scoped, tag = 'scoped memory for tpu_custom_call.1']
    #allocation8 [shape = 'u8[8192]{0}', space=vmem, size = 0x2000, scoped, tag = 'output window, operand 1']
    #allocation9 [shape = 's32[2]{0}', space=sflag, size = 0x8, scoped, tag = 'scoped memory for tpu_custom_call.1']
    #allocation10 [shape = 'u8[8192]{0}', space=vmem, size = 0x2000, scoped, tag = 'output window, operand 2']
    %24 = vsyncpa [#allocation7], 0
    %s25 = scalar_lea.sflag [#allocation7], 1
    %26 = vsyncpa %s25, 0
    %27 = vsyncpa [#allocation9], 0
    %s28 = scalar_lea.sflag [#allocation9], 1
    %29 = vsyncpa %s28, 0
    loop: start=0, step=1, limit=4
    $region2: #{tpu_custom_call.1} parent=1 // loop_pre_header
      _
    $region3: #{tpu_custom_call.1} parent=1 // loop_header
      %s31 = sphi 0, %s35
      %p32 = scmp.ge.s32.totalorder %s31, 4
      %s38 = sphi 0, %s50
      %s39 = sphi 0, %s46
      %s40 = sphi 0, %s38
      %s41 = sphi 0, %s39
      %s42 = sphi 0, %s40
      %s43 = sphi 0, %s41
      %s51 = sphi 0, %s51
      %s53 = sphi 0, %s51
      %s54 = sphi 0, %s53
      %s68 = sphi 0, %s54
      %s74 = sphi 0, %s76
      %s77 = sphi 0, %s74
      %s78 = sphi 0, %s77
      %s94 = sphi 0, %s78
      %s100 = sphi 0, %s102
      %s103 = sphi 0, %s100
      %s104 = sphi 0, %s103
      %s120 = sphi 0, %s104
      %s126 = sphi 0, %s128
      %s129 = sphi 0, %s126
      %s130 = sphi 0, %s129
      %s146 = sphi 0, %s130
    $region4: #{tpu_custom_call.1} parent=1 // loop_header_branch
      %34 = sbr.rel (%p32) target = $region8
    $region5: #{tpu_custom_call.1} parent=1 // loop_body
      %s36 = ssub.s32 %s31, 1
      %s37 = ssub.s32 %s31, 2
      %s44 = sadd.s32 1, %s39
      %p45 = scmp.ge.s32.totalorder %s44, 1
      %s46 = scalar_select %p45, 0, %s44
      %s47 = sadd.s32 1, %s38
      %s48 = scalar_select %p45, %s47, %s38
      %p49 = scmp.ge.s32.totalorder %s48, 2
      %s50 = scalar_select %p49, 0, %s48
      %s52 = sadd.s32 %s51, 1
      %p55 = scmp.eq.s32.totalorder %s31, 1
      %p56 = scmp.ne.s32.totalorder %s51, %s53
      %p57 = scmp.eq.s32.totalorder %s31, 0
      %p58 = por %p56, %p57
      %p59 = scmp.ne.s32.totalorder %s51, %s53
      %p60 = scmp.eq.s32.totalorder %s36, 1
      %p61 = por %p59, %p60
      %p62 = scmp.ne.s32.totalorder %s53, %s54
      %p63 = scmp.eq.s32.totalorder %s36, 0
      %p64 = por %p62, %p63
      %p65 = scmp.ne.s32.totalorder %s53, %s54
      %p66 = scmp.eq.s32.totalorder %s37, 1
      %p67 = por %p65, %p66
      %p69 = scmp.ne.s32.totalorder %s54, %s68
      %p70 = scmp.eq.s32.totalorder %s37, 0
      %p71 = por %p69, %p70
      %s72 = ssub.s32 %s38, %s50
      %p73 = scmp.eq.s32.totalorder %s72, 0
      %s75 = sadd.s32 %s74, 1
      %s76 = scalar_select %p73, %s74, %s75
      %p79 = pneg %p73
      %p80 = scmp.eq.s32.totalorder %s31, 1
      %p81 = por %p79, %p80
      %p82 = scmp.ne.s32.totalorder %s74, %s77
      %p83 = scmp.eq.s32.totalorder %s31, 0
      %p84 = por %p82, %p83
      %p85 = scmp.ne.s32.totalorder %s74, %s77
      %p86 = scmp.eq.s32.totalorder %s36, 1
      %p87 = por %p85, %p86
      %p88 = scmp.ne.s32.totalorder %s77, %s78
      %p89 = scmp.eq.s32.totalorder %s36, 0
      %p90 = por %p88, %p89
      %p91 = scmp.ne.s32.totalorder %s77, %s78
      %p92 = scmp.eq.s32.totalorder %s37, 1
      %p93 = por %p91, %p92
      %p95 = scmp.ne.s32.totalorder %s78, %s94
      %p96 = scmp.eq.s32.totalorder %s37, 0
      %p97 = por %p95, %p96
      %s98 = ssub.s32 %s38, %s50
      %p99 = scmp.eq.s32.totalorder %s98, 0
      %s101 = sadd.s32 %s100, 1
      %s102 = scalar_select %p99, %s100, %s101
      %p105 = pneg %p99
      %p106 = scmp.eq.s32.totalorder %s31, 1
      %p107 = por %p105, %p106
      %p108 = scmp.ne.s32.totalorder %s100, %s103
      %p109 = scmp.eq.s32.totalorder %s31, 0
      %p110 = por %p108, %p109
      %p111 = scmp.ne.s32.totalorder %s100, %s103
      %p112 = scmp.eq.s32.totalorder %s36, 1
      %p113 = por %p111, %p112
      %p114 = scmp.ne.s32.totalorder %s103, %s104
      %p115 = scmp.eq.s32.totalorder %s36, 0
      %p116 = por %p114, %p115
      %p117 = scmp.ne.s32.totalorder %s103, %s104
      %p118 = scmp.eq.s32.totalorder %s37, 1
      %p119 = por %p117, %p118
      %p121 = scmp.ne.s32.totalorder %s104, %s120
      %p122 = scmp.eq.s32.totalorder %s37, 0
      %p123 = por %p121, %p122
      %s124 = ssub.s32 %s38, %s50
      %p125 = scmp.eq.s32.totalorder %s124, 0
      %s127 = sadd.s32 %s126, 1
      %s128 = scalar_select %p125, %s126, %s127
      %p131 = pneg %p125
      %p132 = scmp.eq.s32.totalorder %s31, 1
      %p133 = por %p131, %p132
      %p134 = scmp.ne.s32.totalorder %s126, %s129
      %p135 = scmp.eq.s32.totalorder %s31, 0
      %p136 = por %p134, %p135
      %p137 = scmp.ne.s32.totalorder %s126, %s129
      %p138 = scmp.eq.s32.totalorder %s36, 1
      %p139 = por %p137, %p138
      %p140 = scmp.ne.s32.totalorder %s129, %s130
      %p141 = scmp.eq.s32.totalorder %s36, 0
      %p142 = por %p140, %p141
      %p143 = scmp.ne.s32.totalorder %s129, %s130
      %p144 = scmp.eq.s32.totalorder %s37, 1
      %p145 = por %p143, %p144
      %p147 = scmp.ne.s32.totalorder %s130, %s146
      %p148 = scmp.eq.s32.totalorder %s37, 0
      %p149 = por %p147, %p148
      %p150 = scmp.le.s32.totalorder 1, %s31
      %p151 = scmp.lt.s32.totalorder %s31, 3
      %p152 = pnand %p150, %p151
      %p153 = pneg %p152
      // Predicated region
      $region9: #{tpu_custom_call.1} parent=5 // pred_check
        _
      $region10: #{tpu_custom_call.1} parent=5 // pred_check_branch
        %155 = sbr.rel (%p152) target = $region12
      $region11: #{tpu_custom_call.1} parent=5 // pred_region
        %s156 = ssub.s32 %s31, 1
        // Predicated region
        $region13: #{tpu_custom_call.1} parent=11 // pred_check
          %p157 = pneg %p64
        $region14: #{tpu_custom_call.1} parent=11 // pred_check_branch
          %159 = sbr.rel (%p157) target = $region16
        $region15: #{tpu_custom_call.1} parent=11 // pred_region
          _
        $region16: #{tpu_custom_call.1} parent=11 // pred_fallthru
          _
      $region12: #{tpu_custom_call.1} parent=5 // pred_fallthru
        _
      %p160 = scmp.lt.s32.totalorder %s31, 2
      // Predicated region
      $region17: #{tpu_custom_call.1} parent=5 // pred_check
        %p161 = pneg %p160
      $region18: #{tpu_custom_call.1} parent=5 // pred_check_branch
        %163 = sbr.rel (%p161) target = $region20
      $region19: #{tpu_custom_call.1} parent=5 // pred_region
        _
      $region20: #{tpu_custom_call.1} parent=5 // pred_fallthru
        _
      %p164 = scmp.le.s32.totalorder 1, %s31
      %p165 = scmp.lt.s32.totalorder %s31, 3
      %p166 = pnand %p164, %p165
      %p167 = pneg %p166
      // Predicated region
      $region21: #{tpu_custom_call.1} parent=5 // pred_check
        _
      $region22: #{tpu_custom_call.1} parent=5 // pred_check_branch
        %169 = sbr.rel (%p166) target = $region24
      $region23: #{tpu_custom_call.1} parent=5 // pred_region
        %s170 = ssub.s32 %s31, 1
        %p171 = pneg %p64
        %p172 = pneg %p61
        %p173 = pneg %p90
        %p174 = pneg %p87
        %s175 = sand.u32 %s77, 1
        %s176 = scalar_lea.sflag [#allocation7], %s175
        %s177 = sand.u32 %s77, 1
        %s178 = smul.addr %s177, 8
        %s179 = scalar_lea.vmem [#allocation6], %s178
        %p180 = pneg %p116
        %p181 = pneg %p113
        %s182 = sand.u32 %s36, 1
        %s183 = scalar_lea.sflag [#allocation9], %s182
        %s184 = sand.u32 %s103, 1
        %s185 = smul.addr %s184, 8
        %s186 = scalar_lea.vmem [#allocation8], %s185
        %p187 = pneg %p142
        %p188 = pneg %p139
        %s189 = sand.u32 %s36, 1
        %s190 = scalar_lea.sflag [#allocation9], %s189
        %s191 = sand.u32 %s129, 1
        %s192 = smul.addr %s191, 8
        %s193 = scalar_lea.vmem [#allocation10], %s192
        %s195 = sadd.s32 %s40, %s41
        %s196 = sld [smem:[#allocation3 + %s195]]
        %s197 = sld [smem:[#allocation4 + %s195]]
        %s198 = sld [smem:[#allocation5 + %s195]]
        %s199 = scvt.s32.f32 %s198
        %p200 = scmp.eq.s32.totalorder %s41, 0
        // Predicated region
        $region25: #{tpu_custom_call.1} parent=23 // pred_check
          %p201 = pneg %p200
        $region26: #{tpu_custom_call.1} parent=23 // pred_check_branch
          %203 = sbr.rel (%p201) target = $region28
        $region27: #{tpu_custom_call.1} parent=23 // pred_region
          %vm204 = vcmask 64512
          %205 = vst.msk [vmem:[%s179] sm:$0xff] %vm204, 0.0
          %206 = vst.msk [vmem:[%s186] sm:$0xff] %vm204, 0.0
          %207 = vst.msk [vmem:[%s193] sm:$0xff] %vm204, 0.0
        $region28: #{tpu_custom_call.1} parent=23 // pred_fallthru
          _
        %s208 = smul.u32 %s196, 8
        %s209 = sshra.s32 %s208, 3
        %s210 = sand.u32 %s208, 7
        %s211 = smul.addr %s209, 4
        %s212 = scalar_lea.vmem %s3, %s211
        %v213 = vld [vmem:[%s212] sm:$0xf]
        %s214 = smul.u32 %s197, 8
        %s215 = sshra.s32 %s214, 3
        %s216 = sand.u32 %s214, 7
        %s217 = smul.addr %s215, 4
        %s218 = scalar_lea.vmem %s3, %s217
        %v219 = vld [vmem:[%s218] sm:$0xf]
        %vm220 = vcmask 261120
        %v222 = vsel %vm220, %v213, 0
        %v225 = vsel %vm220, %v219, 0
        %227 = vmatprep.subr.bf16.mxu0 0
        %228 = vmatpush1.bf16.xpose.msra.mxu0 %v225
        %229 = vmatprep.subr.bf16.mxu0 0
        %230 = vmatpush1.bf16.xpose.msra.mxu0 0
        %231 = vmatprep.subr.bf16.mxu0 0
        %232 = vmatpush1.bf16.xpose.msra.mxu0 0
        %233 = vmatprep.subr.bf16.mxu0 0
        %234 = vmatpush1.bf16.xpose.msra.mxu0 0
        %235 = vmatprep.subr.bf16.mxu0 0
        %236 = vmatpush1.bf16.xpose.msra.mxu0 0
        %237 = vmatprep.subr.bf16.mxu0 0
        %238 = vmatpush1.bf16.xpose.msra.mxu0 0
        %239 = vmatprep.subr.bf16.mxu0 0
        %240 = vmatpush1.bf16.xpose.msra.mxu0 0
        %241 = vmatprep.subr.bf16.mxu0 0
        %242 = vmatpush1.bf16.xpose.msra.mxu0 0
        %243 = vmatprep.subr.bf16.mxu0 0
        %244 = vmatpush1.bf16.xpose.msra.mxu0 0
        %245 = vmatprep.subr.bf16.mxu0 0
        %246 = vmatpush1.bf16.xpose.msra.mxu0 0
        %247 = vmatprep.subr.bf16.mxu0 0
        %248 = vmatpush1.bf16.xpose.msra.mxu0 0
        %249 = vmatprep.subr.bf16.mxu0 0
        %250 = vmatpush1.bf16.xpose.msra.mxu0 0
        %251 = vmatprep.subr.bf16.mxu0 0
        %252 = vmatpush1.bf16.xpose.msra.mxu0 0
        %253 = vmatprep.subr.bf16.mxu0 0
        %254 = vmatpush1.bf16.xpose.msra.mxu0 0
        %255 = vmatprep.subr.bf16.mxu0 0
        %256 = vmatpush1.bf16.xpose.msra.mxu0 0
        %257 = vmatprep.subr.bf16.mxu0 0
        %258 = vmatpush1.bf16.xpose.msra.mxu0 0
        %259 = vmatprep.mubr.bf16.mxu0 0
        %260 = vmatmul.mubr.bf16.gmra.mrb[0].mxu0 %v222
        %v261 = vpop.f32.mrb[0].mxu0
        %v262 = vadd.f32 0.0, %v261
        %v263 = vpop.f32.mrb[0].mxu0
        %v264 = vpop.f32.mrb[0].mxu0
        %v265 = vpop.f32.mrb[0].mxu0
        %266 = vdwg.mxu0
        %v267 = vlaneseq
        %v268 = vshrl.u32 %v267, 7
        %v269 = vlaneseq
        %v270 = vand.u32 %v269, 127
        %v271 = vstv %s208
        %v272 = vadd.s32 %v268, %v271
        %vm273 = vcmp.lt.s32.totalorder %v272, 6
        %v274 = vsel %vm273, 0.0, -1e+09
        %v275 = vstv %s214
        %v276 = vadd.s32 %v270, %v275
        %vm277 = vcmp.lt.s32.totalorder %v276, 6
        %v278 = vsel %vm277, 0.0, -1e+09
        %v279 = vmul.f32 %v262, 2.0
        %v280 = vadd.f32 %v279, %v274
        %v281 = vadd.f32 %v280, %v278
        %v282 = vmul.f32 %v281, 1.442695
        %v283 = vpow.pop %v282
        %v284 = vld [vmem:[%s179] sm:$0xff]
        %v285 = vadd.f32 %v283, 0.0
        %v286 = vstv %s199
        %v287 = vmul.f32 %v286, %v285
        %v288 = vadd.f32 %v284, %v287
        %vm289 = vcmask 64512
        %290 = vst.msk [vmem:[%s179] sm:$0xff] %vm289, %v288
        %s291 = ssub.s32 %s197, %s196
        %s292 = smul.u32 %s291, 8
        %s293 = ssub.s32 %s292, 7
        %s294 = sadd.s32 %s292, 7
        %p295 = scmp.le.s32.totalorder %s293, 2
        %p296 = scmp.ge.s32.totalorder %s294, 2
        %p297 = pnand %p295, %p296
        %p298 = pneg %p297
        %p299 = scmp.le.s32.totalorder %s293, 4294967294
        %p300 = scmp.ge.s32.totalorder %s294, 4294967294
        %p301 = pnand %p299, %p300
        %p302 = pneg %p301
        %p303 = por %p298, %p302
        %p304 = scmp.le.s32.totalorder %s293, 4
        %p305 = scmp.ge.s32.totalorder %s294, 4
        %p306 = pnand %p304, %p305
        %p307 = pneg %p306
        %p308 = scmp.le.s32.totalorder %s293, 4294967292
        %p309 = scmp.ge.s32.totalorder %s294, 4294967292
        %p310 = pnand %p308, %p309
        %p311 = pneg %p310
        %p312 = por %p307, %p311
        %p313 = por %p303, %p312
        %p314 = scmp.le.s32.totalorder %s293, 6
        %p315 = scmp.ge.s32.totalorder %s294, 6
        %p316 = pnand %p314, %p315
        %p317 = pneg %p316
        %p318 = scmp.le.s32.totalorder %s293, 4294967290
        %p319 = scmp.ge.s32.totalorder %s294, 4294967290
        %p320 = pnand %p318, %p319
        %p321 = pneg %p320
        %p322 = por %p317, %p321
        %p323 = por %p313, %p322
        // Predicated region
        $region29: #{tpu_custom_call.1} parent=23 // pred_check
          %p324 = pneg %p323
        $region30: #{tpu_custom_call.1} parent=23 // pred_check_branch
          %326 = sbr.rel (%p324) target = $region32
        $region31: #{tpu_custom_call.1} parent=23 // pred_region
          %v327 = vsub.s32 %v270, %v268
          %v328 = vstv %s292
          %v329 = vadd.s32 %v327, %v328
          %vm330 = vcmp.lt.s32.totalorder %v329, 0
          %v331 = vsub.s32 0, %v329
          %v332 = vsel %vm330, %v331, %v329
          %vm333 = vcmp.eq.s32.totalorder %v332, 2
          %vm334 = vcmp.eq.s32.totalorder %v332, 4
          %vm335 = vmor %vm333, %vm334
          %vm336 = vcmp.eq.s32.totalorder %v332, 6
          %vm337 = vmor %vm335, %vm336
          %v338 = vld [vmem:[%s186] sm:$0xff]
          %v339 = vsel %vm337, %v283, 0.0
          %v340 = vadd.f32 %v339, 0.0
          %v341 = vmul.f32 %v286, %v340
          %v342 = vadd.f32 %v338, %v341
          %343 = vst.msk [vmem:[%s186] sm:$0xff] %vm289, %v342
        $region32: #{tpu_custom_call.1} parent=23 // pred_fallthru
          _
        %p344 = scmp.eq.s32.totalorder %s196, %s197
        %p345 = scmp.gt.s32.totalorder %s198, 0
        %p346 = pnand %p344, %p345
        %p347 = pneg %p346
        // Predicated region
        $region33: #{tpu_custom_call.1} parent=23 // pred_check
          _
        $region34: #{tpu_custom_call.1} parent=23 // pred_check_branch
          %349 = sbr.rel (%p346) target = $region36
        $region35: #{tpu_custom_call.1} parent=23 // pred_region
          %vm350 = vcmp.eq.s32.totalorder %v268, %v270
          %v351 = vld [vmem:[%s193] sm:$0xff]
          %v352 = vsel %vm350, %v283, 0.0
          %v353 = vadd.f32 %v352, 0.0
          %v354 = vadd.f32 %v351, %v353
          %355 = vst.msk [vmem:[%s193] sm:$0xff] %vm289, %v354
        $region36: #{tpu_custom_call.1} parent=23 // pred_fallthru
          _
        %s356 = sand.u32 %s77, 1
        %s357 = scalar_lea.sflag [#allocation7], %s356
        %s358 = sand.u32 %s77, 1
        %s359 = smul.addr %s358, 8
        %s360 = scalar_lea.vmem [#allocation6], %s359
        %s361 = sand.u32 %s36, 1
        %s362 = scalar_lea.sflag [#allocation9], %s361
        %s363 = sand.u32 %s103, 1
        %s364 = smul.addr %s363, 8
        %s365 = scalar_lea.vmem [#allocation8], %s364
        %s366 = sand.u32 %s36, 1
        %s367 = scalar_lea.sflag [#allocation9], %s366
        %s368 = sand.u32 %s129, 1
        %s369 = smul.addr %s368, 8
        %s370 = scalar_lea.vmem [#allocation10], %s369
        // Predicated region
        $region37: #{tpu_custom_call.1} parent=23 // pred_check
          %p371 = pneg %p87
        $region38: #{tpu_custom_call.1} parent=23 // pred_check_branch
          %373 = sbr.rel (%p371) target = $region40
        $region39: #{tpu_custom_call.1} parent=23 // pred_region
          %s375 = ssub.s32 128, 128
          %376 = vsyncadd %s357, %s375
          %s377 = smul.addr %s40, 128
          %s378 = scalar_lea.hbm %s4, %s377
          %s380 = sshll.u32 %s360, 4
          %s381 = int_to_ptr.vmem [resolvable:$true] %s380
          %383 = dma.vmem_to_hbm [thread:$0]  %s381, 128, %s378, %s357
        $region40: #{tpu_custom_call.1} parent=23 // pred_fallthru
          _
        // Predicated region
        $region41: #{tpu_custom_call.1} parent=23 // pred_check
          %p384 = pneg %p113
        $region42: #{tpu_custom_call.1} parent=23 // pred_check_branch
          %386 = sbr.rel (%p384) target = $region44
        $region43: #{tpu_custom_call.1} parent=23 // pred_region
          %s388 = ssub.s32 128, 128
          %389 = vsyncadd %s362, %s388
          %s390 = smul.addr %s40, 128
          %s391 = scalar_lea.hbm %s5, %s390
          %s393 = sshll.u32 %s365, 4
          %s394 = int_to_ptr.vmem [resolvable:$true] %s393
          %396 = dma.vmem_to_hbm [thread:$0]  %s394, 128, %s391, %s362
        $region44: #{tpu_custom_call.1} parent=23 // pred_fallthru
          _
        // Predicated region
        $region45: #{tpu_custom_call.1} parent=23 // pred_check
          %p397 = pneg %p139
        $region46: #{tpu_custom_call.1} parent=23 // pred_check_branch
          %399 = sbr.rel (%p397) target = $region48
        $region47: #{tpu_custom_call.1} parent=23 // pred_region
          %s401 = ssub.s32 128, 128
          %402 = vsyncadd %s367, %s401
          %s403 = smul.addr %s40, 128
          %s404 = scalar_lea.hbm %s6, %s403
          %s406 = sshll.u32 %s370, 4
          %s407 = int_to_ptr.vmem [resolvable:$true] %s406
          %409 = dma.vmem_to_hbm [thread:$0]  %s407, 128, %s404, %s367
        $region48: #{tpu_custom_call.1} parent=23 // pred_fallthru
          _
      $region24: #{tpu_custom_call.1} parent=5 // pred_fallthru
        _
      %p410 = scmp.le.s32.totalorder 2, %s31
      // Predicated region
      $region49: #{tpu_custom_call.1} parent=5 // pred_check
        %p411 = pneg %p410
      $region50: #{tpu_custom_call.1} parent=5 // pred_check_branch
        %413 = sbr.rel (%p411) target = $region52
      $region51: #{tpu_custom_call.1} parent=5 // pred_region
        %s414 = ssub.s32 %s31, 2
        // Predicated region
        $region53: #{tpu_custom_call.1} parent=51 // pred_check
          %p415 = pneg %p93
        $region54: #{tpu_custom_call.1} parent=51 // pred_check_branch
          %417 = sbr.rel (%p415) target = $region56
        $region55: #{tpu_custom_call.1} parent=51 // pred_region
          %s418 = sand.u32 %s78, 1
          %s419 = scalar_lea.sflag [#allocation7], %s418
          %s420 = sand.u32 %s78, 1
          %s421 = smul.addr %s420, 8
          %s422 = scalar_lea.vmem [#allocation6], %s421
          %423 = dma.done %s419, 128
        $region56: #{tpu_custom_call.1} parent=51 // pred_fallthru
          _
        // Predicated region
        $region57: #{tpu_custom_call.1} parent=51 // pred_check
          %p424 = pneg %p119
        $region58: #{tpu_custom_call.1} parent=51 // pred_check_branch
          %426 = sbr.rel (%p424) target = $region60
        $region59: #{tpu_custom_call.1} parent=51 // pred_region
          %s427 = sand.u32 %s37, 1
          %s428 = scalar_lea.sflag [#allocation9], %s427
          %s429 = sand.u32 %s104, 1
          %s430 = smul.addr %s429, 8
          %s431 = scalar_lea.vmem [#allocation8], %s430
          %432 = dma.done %s428, 128
        $region60: #{tpu_custom_call.1} parent=51 // pred_fallthru
          _
        // Predicated region
        $region61: #{tpu_custom_call.1} parent=51 // pred_check
          %p433 = pneg %p145
        $region62: #{tpu_custom_call.1} parent=51 // pred_check_branch
          %435 = sbr.rel (%p433) target = $region64
        $region63: #{tpu_custom_call.1} parent=51 // pred_region
          %s436 = sand.u32 %s37, 1
          %s437 = scalar_lea.sflag [#allocation9], %s436
          %s438 = sand.u32 %s130, 1
          %s439 = smul.addr %s438, 8
          %s440 = scalar_lea.vmem [#allocation10], %s439
          %441 = dma.done %s437, 128
        $region64: #{tpu_custom_call.1} parent=51 // pred_fallthru
          _
      $region52: #{tpu_custom_call.1} parent=5 // pred_fallthru
        _
    $region6: #{tpu_custom_call.1} parent=1 // loop_footer
      %s35 = sadd.s32 1, %s31
    $region7: #{tpu_custom_call.1} parent=1 // loop_footer_branch
      %30 = sbr.rel target = $region3
    $region8: #{tpu_custom_call.1} parent=1 // loop_exit
      _
    %442 = vsyncpa [#allocation7], 1
    %s443 = scalar_lea.sflag [#allocation7], 1
    %444 = vsyncpa %s443, 1
    %445 = vsyncpa [#allocation9], 1
    %s446 = scalar_lea.sflag [#allocation9], 1
    %447 = vsyncpa %s446, 1

</llo_original>
